<compile_context>
chip_gen: v7x
topology: tpu7x:2x2x1
jax: 0.10.0
libtpu: 0.0.40
codegen_flags: <defaults>
</compile_context>

<pallas_src>
import math

import jax
import jax.numpy as jnp
from jax.experimental import pallas as pl
from jax.experimental.pallas import tpu as pltpu

CNN_KERNEL_NUM = 128  # args.cnn_kernel_num (hidden size H; lane-dense)


def _cross_attn_kernel(q_ref, a_ref, qm_ref, am_ref, temp_ref,
                       q_out_ref, a_out_ref):
    # q_ref:  (Bb, Lq, H) f32    a_ref:  (Bb, La, H) f32
    # qm_ref: (Bb, Lq, 1) f32    am_ref: (Bb, 1, La) f32 (pre-transposed)
    # temp_ref: (1,) f32 in SMEM
    # q_out_ref: (Bb, Lq, 2H)    a_out_ref: (Bb, La, 2H)
    q = q_ref[...]
    a = a_ref[...]
    qm = qm_ref[...]
    am = am_ref[...]
    H = q.shape[-1]
    temp = temp_ref[0]                       # scalar from SMEM

    # attn = (q @ a^T) * temperature   (batched over the block batch dim)
    attn = jnp.einsum("bqh,bkh->bqk", q, a,
                      preferred_element_type=jnp.float32) * temp

    # mask = outer(q_mask, a_mask); masked_fill_(~mask, -1e7)
    # (exact PyTorch semantics, incl. uniform softmax on fully-masked rows/cols)
    keep = (qm * am) > 0.0                   # (Bb, Lq, La) via broadcast
    attn = jnp.where(keep, attn, jnp.float32(-1e7))

    # softmax over dim=1 (Lq axis, per-column)
    e_q = jnp.exp(attn - jnp.max(attn, axis=1, keepdims=True))
    col_sum = jnp.sum(e_q, axis=1, keepdims=True)
    inv_col = pl.reciprocal(col_sum, approx=True)        # EUP slot
    inv_col = inv_col * (2.0 - col_sum * inv_col)        # 1 NR step -> ~f32 exact
    attn_q = e_q * inv_col

    # softmax over dim=2 (La axis, per-row)
    e_a = jnp.exp(attn - jnp.max(attn, axis=2, keepdims=True))
    row_sum = jnp.sum(e_a, axis=2, keepdims=True)
    inv_row = pl.reciprocal(row_sum, approx=True)
    inv_row = inv_row * (2.0 - row_sum * inv_row)
    attn_a = e_a * inv_row

    # a_s = attn_q^T @ q ; q_s = attn_a @ a
    # TODO(synk): cast operands to bf16 (keep f32 accumulation) once the
    # long-sequence tiling makes these MXU-throughput-bound.
    a_s = jnp.einsum("bqk,bqh->bkh", attn_q, q,
                     preferred_element_type=jnp.float32)   # (Bb, La, H)
    q_s = jnp.einsum("bqk,bkh->bqh", attn_a, a,
                     preferred_element_type=jnp.float32)   # (Bb, Lq, H)

    # Fused concatenation (lane-aligned 128-wide halves of a 256-lane output).
    q_out_ref[:, :, :H] = q.astype(q_out_ref.dtype)
    q_out_ref[:, :, H:] = q_s.astype(q_out_ref.dtype)
    a_out_ref[:, :, :H] = a.astype(a_out_ref.dtype)
    a_out_ref[:, :, H:] = a_s.astype(a_out_ref.dtype)


def _tensorcores_per_chip():
    """2 on v7x (2 TCs/chip), 1 on v5e/v6e; conservative fallback = 1."""
    try:
        kind = jax.devices()[0].device_kind.lower()
        if "v7" in kind or "7x" in kind:
            return 2
    except Exception:
        pass
    return 1


def one_scale_one_attention(q, a, q_mask, a_mask, temperature):
    """q: (B, Lq, H) f32, a: (B, La, H) f32, *_mask: (B, L, 1) bool/0-1.

    Returns (q_cat (B, Lq, 2H), a_cat (B, La, 2H)), matching the PyTorch
    OneScaleOneAttentionLayer.forward.
    """
    B, Lq, H = q.shape
    _, La, _ = a.shape

    qm = q_mask.reshape(B, Lq, 1).astype(jnp.float32)
    am = a_mask.astype(jnp.float32).reshape(B, 1, La)     # pre-transposed
    temp = jnp.asarray(temperature, dtype=jnp.float32).reshape(1)

    # Generation-aware batch blocking:
    #   single-TC (v5e/v6e): one fat grid step covering the whole batch.
    #   2-TC (v7x):         >=2 "parallel" steps so both TensorCores work.
    n_tc = _tensorcores_per_chip()
    n_steps = max(1, min(B, n_tc))
    if B % n_steps != 0:            # keep blocks exact; fall back to per-batch
        n_steps = B
    b_blk = B // n_steps

    flops = 6 * B * Lq * La * H + 8 * B * Lq * La
    transcendentals = 2 * B * Lq * La
    bytes_accessed = 4 * (B * Lq * H + B * La * H + B * Lq + B * La + 1
                          + B * Lq * 2 * H + B * La * 2 * H)

    q_out, a_out = pl.pallas_call(
        _cross_attn_kernel,
        out_shape=(jax.ShapeDtypeStruct((B, Lq, 2 * H), q.dtype),
                   jax.ShapeDtypeStruct((B, La, 2 * H), a.dtype)),
        grid_spec=pltpu.PrefetchScalarGridSpec(
            num_scalar_prefetch=0,
            grid=(n_steps,),
            in_specs=[
                pl.BlockSpec((b_blk, Lq, H), lambda b: (b, 0, 0)),   # q tile
                pl.BlockSpec((b_blk, La, H), lambda b: (b, 0, 0)),   # a tile
                pl.BlockSpec((b_blk, Lq, 1), lambda b: (b, 0, 0)),   # q_mask f32
                pl.BlockSpec((b_blk, 1, La), lambda b: (b, 0, 0)),   # a_mask^T f32
                pl.BlockSpec(memory_space=pltpu.MemorySpace.SMEM),   # temperature
            ],
            out_specs=(
                pl.BlockSpec((b_blk, Lq, 2 * H), lambda b: (b, 0, 0)),
                pl.BlockSpec((b_blk, La, 2 * H), lambda b: (b, 0, 0)),
            ),
        ),
        compiler_params=pltpu.CompilerParams(
            dimension_semantics=("parallel",)),
        cost_estimate=pl.CostEstimate(flops=flops,
                                      transcendentals=transcendentals,
                                      bytes_accessed=bytes_accessed),
    )(q, a, qm, am, temp)

    return q_out, a_out


def reference(q, a, q_mask, a_mask, temperature):
    attn = jnp.einsum("bqh,bkh->bqk", q, a) * temperature
    mask = jnp.einsum("bqi,bki->bqk",
                      q_mask.astype(jnp.float32),
                      a_mask.astype(jnp.float32)) > 0
    attn = jnp.where(mask, attn, jnp.float32(-1e7))
    attn_q = jax.nn.softmax(attn, axis=1)
    attn_a = jax.nn.softmax(attn, axis=2)
    a_s = jnp.einsum("bqk,bqh->bkh", attn_q, q)
    q_s = jnp.einsum("bqk,bkh->bqh", attn_a, a)
    return (jnp.concatenate([q, q_s], axis=-1),
            jnp.concatenate([a, a_s], axis=-1))


if __name__ == "__main__":
    key = jax.random.PRNGKey(0)
    kq, ka, kqm, kam = jax.random.split(key, 4)

    B, Lq, La, H = 2, 16, 24, CNN_KERNEL_NUM

    q = jax.random.normal(kq, (B, Lq, H), dtype=jnp.float32)
    a = jax.random.normal(ka, (B, La, H), dtype=jnp.float32)
    q_mask = jax.random.uniform(kqm, (B, Lq, 1)) > 0.25   # True = keep
    a_mask = jax.random.uniform(kam, (B, La, 1)) > 0.25
    temperature = jnp.float32(1.0 / math.sqrt(H))          # nn.Parameter init

    q_out, a_out = one_scale_one_attention(q, a, q_mask, a_mask, temperature)
    q_out, a_out = jax.block_until_ready((q_out, a_out))

    q_ref_out, a_ref_out = reference(q, a, q_mask, a_mask, temperature)
    assert q_out.shape == (B, Lq, 2 * H)
    assert a_out.shape == (B, La, 2 * H)
    assert jnp.allclose(q_out, q_ref_out, atol=1e-3, rtol=1e-3)
    assert jnp.allclose(a_out, a_ref_out, atol=1e-3, rtol=1e-3)

    print("KERNEL_OK")
</pallas_src>

<mosaic_0001>
module attributes {stable_mosaic.version = 11 : i64} {
  func.func @_cross_attn_kernel(%arg0: i32, %arg1: memref<2x16x128xf32, #tpu.memory_space<vmem>>, %arg2: memref<2x24x128xf32, #tpu.memory_space<vmem>>, %arg3: memref<2x16x1xf32, #tpu.memory_space<vmem>>, %arg4: memref<2x1x24xf32, #tpu.memory_space<vmem>>, %arg5: memref<1xf32, #tpu.memory_space<smem>>, %arg6: memref<2x16x256xf32, #tpu.memory_space<vmem>>, %arg7: memref<2x24x256xf32, #tpu.memory_space<vmem>>) attributes {dimension_semantics = [#tpu.dimension_semantics<parallel>], iteration_bounds = array<i64: 1>, scalar_prefetch = 0 : i64, scratch_operands = 0 : i64, tpu.core_type = #tpu.core_type<tc>, window_params = [{transform_indices = @transform_0, window_bounds = array<i64: 2, 16, 128>}, {transform_indices = @transform_1, window_bounds = array<i64: 2, 24, 128>}, {transform_indices = @transform_2, window_bounds = array<i64: 2, 16, 1>}, {transform_indices = @transform_3, window_bounds = array<i64: 2, 1, 24>}, {transform_indices = @transform_4, window_bounds = array<i64: 1>}, {transform_indices = @transform_5, window_bounds = array<i64: 2, 16, 256>}, {transform_indices = @transform_6, window_bounds = array<i64: 2, 24, 256>}]} {
    %c0 = arith.constant 0 : index
    %c0_0 = arith.constant 0 : index
    %c0_1 = arith.constant 0 : index
    %0 = vector.load %arg1[%c0, %c0_0, %c0_1] : memref<2x16x128xf32, #tpu.memory_space<vmem>>, vector<2x16x128xf32>
    %c0_2 = arith.constant 0 : index
    %c0_3 = arith.constant 0 : index
    %c0_4 = arith.constant 0 : index
    %1 = vector.load %arg2[%c0_2, %c0_3, %c0_4] : memref<2x24x128xf32, #tpu.memory_space<vmem>>, vector<2x24x128xf32>
    %c0_5 = arith.constant 0 : index
    %c0_6 = arith.constant 0 : index
    %c0_7 = arith.constant 0 : index
    %2 = vector.load %arg3[%c0_5, %c0_6, %c0_7] : memref<2x16x1xf32, #tpu.memory_space<vmem>>, vector<2x16x1xf32>
    %c0_8 = arith.constant 0 : index
    %c0_9 = arith.constant 0 : index
    %c0_10 = arith.constant 0 : index
    %3 = vector.load %arg4[%c0_8, %c0_9, %c0_10] : memref<2x1x24xf32, #tpu.memory_space<vmem>>, vector<2x1x24xf32>
    %c0_11 = arith.constant 0 : index
    %4 = memref.load %arg5[%c0_11] : memref<1xf32, #tpu.memory_space<smem>>
    "tpu.trace_start"() <{level = 10 : i32, message = "bqh,bkh->bqk"}> : () -> ()
    %cst = arith.constant dense<0.000000e+00> : vector<2x16x24xf32>
    %5 = tpu.matmul %0, %1, %cst {dimension_numbers = #tpu.dot_dimension_numbers<[2], [2], [1], [1], [0, 0, 0, 1, 1, 1], [0], [0]>} : vector<2x16x128xf32>, vector<2x24x128xf32>, vector<2x16x24xf32> -> vector<2x16x24xf32>
    "tpu.trace_stop"() : () -> ()
    %6 = vector.broadcast %4 : f32 to vector<2x16x24xf32>
    %7 = arith.mulf %5, %6 : vector<2x16x24xf32>
    %8 = vector.broadcast %2 : vector<2x16x1xf32> to vector<2x16x24xf32>
    %9 = vector.broadcast %3 : vector<2x1x24xf32> to vector<2x16x24xf32>
    %10 = arith.mulf %8, %9 : vector<2x16x24xf32>
    %cst_12 = arith.constant 0.000000e+00 : f32
    %11 = vector.broadcast %cst_12 : f32 to vector<2x16x24xf32>
    %12 = arith.cmpf ogt, %10, %11 : vector<2x16x24xf32>
    %cst_13 = arith.constant -1.000000e+07 : f32
    %13 = vector.broadcast %cst_13 : f32 to vector<2x16x24xf32>
    %14 = arith.select %12, %7, %13 : vector<2x16x24xi1>, vector<2x16x24xf32>
    %cst_14 = arith.constant dense<0xFF800000> : vector<2x24xf32>
    %15 = vector.multi_reduction <maximumf>, %14, %cst_14 [1] : vector<2x16x24xf32> to vector<2x24xf32>
    %16 = vector.shape_cast %15 : vector<2x24xf32> to vector<2x1x24xf32>
    %17 = vector.broadcast %16 : vector<2x1x24xf32> to vector<2x16x24xf32>
    %18 = arith.subf %14, %17 : vector<2x16x24xf32>
    %19 = math.exp %18 : vector<2x16x24xf32>
    %cst_15 = arith.constant dense<0.000000e+00> : vector<2x24xf32>
    %20 = vector.multi_reduction <add>, %19, %cst_15 [1] : vector<2x16x24xf32> to vector<2x24xf32>
    %21 = vector.shape_cast %20 : vector<2x24xf32> to vector<2x1x24xf32>
    %22 = tpu.reciprocal %21 {approx = true} : vector<2x1x24xf32> -> vector<2x1x24xf32>
    %23 = arith.mulf %21, %22 : vector<2x1x24xf32>
    %cst_16 = arith.constant 2.000000e+00 : f32
    %24 = vector.broadcast %cst_16 : f32 to vector<2x1x24xf32>
    %25 = arith.subf %24, %23 : vector<2x1x24xf32>
    %26 = arith.mulf %22, %25 : vector<2x1x24xf32>
    %27 = vector.broadcast %26 : vector<2x1x24xf32> to vector<2x16x24xf32>
    %28 = arith.mulf %19, %27 : vector<2x16x24xf32>
    %cst_17 = arith.constant dense<0xFF800000> : vector<2x16xf32>
    %29 = vector.multi_reduction <maximumf>, %14, %cst_17 [2] : vector<2x16x24xf32> to vector<2x16xf32>
    %30 = vector.shape_cast %29 : vector<2x16xf32> to vector<2x16x1xf32>
    %31 = vector.broadcast %30 : vector<2x16x1xf32> to vector<2x16x24xf32>
    %32 = arith.subf %14, %31 : vector<2x16x24xf32>
    %33 = math.exp %32 : vector<2x16x24xf32>
    %cst_18 = arith.constant dense<0.000000e+00> : vector<2x16xf32>
    %34 = vector.multi_reduction <add>, %33, %cst_18 [2] : vector<2x16x24xf32> to vector<2x16xf32>
    %35 = vector.shape_cast %34 : vector<2x16xf32> to vector<2x16x1xf32>
    %36 = tpu.reciprocal %35 {approx = true} : vector<2x16x1xf32> -> vector<2x16x1xf32>
    %37 = arith.mulf %35, %36 : vector<2x16x1xf32>
    %cst_19 = arith.constant 2.000000e+00 : f32
    %38 = vector.broadcast %cst_19 : f32 to vector<2x16x1xf32>
    %39 = arith.subf %38, %37 : vector<2x16x1xf32>
    %40 = arith.mulf %36, %39 : vector<2x16x1xf32>
    %41 = vector.broadcast %40 : vector<2x16x1xf32> to vector<2x16x24xf32>
    %42 = arith.mulf %33, %41 : vector<2x16x24xf32>
    "tpu.trace_start"() <{level = 10 : i32, message = "bqk,bqh->bkh"}> : () -> ()
    %cst_20 = arith.constant dense<0.000000e+00> : vector<2x24x128xf32>
    %43 = tpu.matmul %28, %0, %cst_20 {dimension_numbers = #tpu.dot_dimension_numbers<[1], [1], [2], [2], [0, 0, 0, 2, 1, 2], [0], [0]>} : vector<2x16x24xf32>, vector<2x16x128xf32>, vector<2x24x128xf32> -> vector<2x24x128xf32>
    "tpu.trace_stop"() : () -> ()
    "tpu.trace_start"() <{level = 10 : i32, message = "bqk,bkh->bqh"}> : () -> ()
    %cst_21 = arith.constant dense<0.000000e+00> : vector<2x16x128xf32>
    %44 = tpu.matmul %42, %1, %cst_21 {dimension_numbers = #tpu.dot_dimension_numbers<[2], [1], [1], [2], [0, 0, 0, 1, 1, 2], [0], [0]>} : vector<2x16x24xf32>, vector<2x24x128xf32>, vector<2x16x128xf32> -> vector<2x16x128xf32>
    "tpu.trace_stop"() : () -> ()
    %c0_22 = arith.constant 0 : index
    %c0_23 = arith.constant 0 : index
    %c0_24 = arith.constant 0 : index
    %45 = vector.load %arg6[%c0_22, %c0_23, %c0_24] : memref<2x16x256xf32, #tpu.memory_space<vmem>>, vector<2x16x128xf32>
    tpu.vector_store %arg6[%c0_22, %c0_23, %c0_24], %0 {strides = array<i32>} : memref<2x16x256xf32, #tpu.memory_space<vmem>>, vector<2x16x128xf32>,
    %c0_25 = arith.constant 0 : index
    %c0_26 = arith.constant 0 : index
    %c128 = arith.constant 128 : index
    %46 = vector.load %arg6[%c0_25, %c0_26, %c128] : memref<2x16x256xf32, #tpu.memory_space<vmem>>, vector<2x16x128xf32>
    tpu.vector_store %arg6[%c0_25, %c0_26, %c128], %44 {strides = array<i32>} : memref<2x16x256xf32, #tpu.memory_space<vmem>>, vector<2x16x128xf32>,
    %c0_27 = arith.constant 0 : index
    %c0_28 = arith.constant 0 : index
    %c0_29 = arith.constant 0 : index
    %47 = vector.load %arg7[%c0_27, %c0_28, %c0_29] : memref<2x24x256xf32, #tpu.memory_space<vmem>>, vector<2x24x128xf32>
    tpu.vector_store %arg7[%c0_27, %c0_28, %c0_29], %1 {strides = array<i32>} : memref<2x24x256xf32, #tpu.memory_space<vmem>>, vector<2x24x128xf32>,
    %c0_30 = arith.constant 0 : index
    %c0_31 = arith.constant 0 : index
    %c128_32 = arith.constant 128 : index
    %48 = vector.load %arg7[%c0_30, %c0_31, %c128_32] : memref<2x24x256xf32, #tpu.memory_space<vmem>>, vector<2x24x128xf32>
    tpu.vector_store %arg7[%c0_30, %c0_31, %c128_32], %43 {strides = array<i32>} : memref<2x24x256xf32, #tpu.memory_space<vmem>>, vector<2x24x128xf32>,
    return
  }
  func.func @transform_0(%arg0: i32) -> (i32, i32, i32) {
    %c0_i32 = arith.constant 0 : i32
    %c0_i32_0 = arith.constant 0 : i32
    %c0_i32_1 = arith.constant 0 : i32
    return %arg0, %c0_i32, %c0_i32_0 : i32, i32, i32
  }
  func.func @transform_1(%arg0: i32) -> (i32, i32, i32) {
    %c0_i32 = arith.constant 0 : i32
    %c0_i32_0 = arith.constant 0 : i32
    %c0_i32_1 = arith.constant 0 : i32
    return %arg0, %c0_i32, %c0_i32_0 : i32, i32, i32
  }
  func.func @transform_2(%arg0: i32) -> (i32, i32, i32) {
    %c0_i32 = arith.constant 0 : i32
    %c0_i32_0 = arith.constant 0 : i32
    %c0_i32_1 = arith.constant 0 : i32
    return %arg0, %c0_i32, %c0_i32_0 : i32, i32, i32
  }
  func.func @transform_3(%arg0: i32) -> (i32, i32, i32) {
    %c0_i32 = arith.constant 0 : i32
    %c0_i32_0 = arith.constant 0 : i32
    %c0_i32_1 = arith.constant 0 : i32
    return %arg0, %c0_i32, %c0_i32_0 : i32, i32, i32
  }
  func.func @transform_4(%arg0: i32) -> i32 {
    %c0_i32 = arith.constant 0 : i32
    %c0_i32_0 = arith.constant 0 : i32
    return %c0_i32 : i32
  }
  func.func @transform_5(%arg0: i32) -> (i32, i32, i32) {
    %c0_i32 = arith.constant 0 : i32
    %c0_i32_0 = arith.constant 0 : i32
    %c0_i32_1 = arith.constant 0 : i32
    return %arg0, %c0_i32, %c0_i32_0 : i32, i32, i32
  }
  func.func @transform_6(%arg0: i32) -> (i32, i32, i32) {
    %c0_i32 = arith.constant 0 : i32
    %c0_i32_0 = arith.constant 0 : i32
    %c0_i32_1 = arith.constant 0 : i32
    return %arg0, %c0_i32, %c0_i32_0 : i32, i32, i32
  }
}

</mosaic_0001>

<llo_original>
// kernel: tpu_custom_call.1
$region0: #{tpu_custom_call.1}
  #allocation0 [shape = 'u32[]', space=smem, size = 0x4, offset = 0x4, fixed_abs, tag = 'smem constant byte address 0x4 - core index']
  #allocation1 [shape = 'u32[144,128]{1,0:T(1,128)}', space=vmem, size = 0x12000, scoped, tag = 'internal scratch']
  #allocation2 [shape = 'f32[1]{0:T(128)S(6)}', space=smem, size = 0x200, scoped, tag = 'scoped memory for tpu_custom_call.1']
  %s0 = inlined_call_operand.vmem [shape: f32[2,16,128], index: 0, kind: input, shape index: {}]
  %s1 = inlined_call_operand.hbm [shape: f32[2,24,128], index: 1, kind: input, shape index: {}]
  %s2 = inlined_call_operand.vmem [shape: f32[2,16,1], index: 2, kind: input, shape index: {}]
  %s3 = inlined_call_operand.vmem [shape: f32[2,1,24], index: 3, kind: input, shape index: {}]
  %s4 = inlined_call_operand.<no memory space> [shape: f32[1], index: 4, kind: input, shape index: {}]
  %s5 = inlined_call_operand.hbm [shape: f32[2,16,256], index: 5, kind: output, shape index: {0}]
  %s6 = inlined_call_operand.hbm [shape: f32[2,24,256], index: 6, kind: output, shape index: {1}]
  %7 = xla_tuple %s5, %s6
  %s8 = sld [smem:[#allocation0]]
  $region42: #{tpu_custom_call.1} parent=0
    _
  %s10 = ssub.s32 1, %s8
  %s11 = scalar_select 0, %s10, %s8
  %12 = sst [smem:[#allocation2]] %s4
  $region1: #{tpu_custom_call.1} parent=0
    #allocation3 [shape = 'u8[24576]{0}', space=vmem, size = 0x6000, scoped, tag = 'input window, operand 1, single buffered']
    #allocation4 [shape = 's32[1]{0}', space=sflag, size = 0x4, scoped, tag = 'scoped memory for tpu_custom_call.1']
    #allocation5 [shape = 's32[1]{0}', space=sflag, size = 0x4, scoped, tag = 'scoped memory for tpu_custom_call.1']
    #allocation6 [shape = 'u8[32768]{0}', space=vmem, size = 0x8000, scoped, tag = 'output window, operand 0, single buffered']
    #allocation7 [shape = 'u8[49152]{0}', space=vmem, size = 0xc000, scoped, tag = 'output window, operand 1, single buffered']
    #allocation8 [shape = 's32[1]{0}', space=sflag, size = 0x4, scoped, tag = 'scoped memory for tpu_custom_call.1']
    %13 = vsyncpa [#allocation4], 0
    %14 = vsyncpa [#allocation5], 0
    %15 = vsyncpa [#allocation8], 0
    // Predicated region
    $region2: #{tpu_custom_call.1} parent=1 // pred_check
      _
    $region3: #{tpu_custom_call.1} parent=1 // pred_check_branch
      %17 = sbr.rel (0) target = $region5
    $region4: #{tpu_custom_call.1} parent=1 // pred_region
      _
    $region5: #{tpu_custom_call.1} parent=1 // pred_fallthru
      _
    // Predicated region
    $region6: #{tpu_custom_call.1} parent=1 // pred_check
      _
    $region7: #{tpu_custom_call.1} parent=1 // pred_check_branch
      %19 = sbr.rel (0) target = $region9
    $region8: #{tpu_custom_call.1} parent=1 // pred_region
      %s21 = ssub.s32 768, 768
      %22 = vsyncadd [#allocation4], %s21
      %s23 = sshll.u32 [#allocation3], 4
      %s24 = int_to_ptr.vmem [resolvable:$true] %s23
      %29 = dma.hbm_to_vmem [thread:$0]  %s1, 768, %s24, [#allocation4], 128, 128, 8
    $region9: #{tpu_custom_call.1} parent=1 // pred_fallthru
      _
    // Predicated region
    $region10: #{tpu_custom_call.1} parent=1 // pred_check
      _
    $region11: #{tpu_custom_call.1} parent=1 // pred_check_branch
      %31 = sbr.rel (0) target = $region13
    $region12: #{tpu_custom_call.1} parent=1 // pred_region
      _
    $region13: #{tpu_custom_call.1} parent=1 // pred_fallthru
      _
    // Predicated region
    $region14: #{tpu_custom_call.1} parent=1 // pred_check
      _
    $region15: #{tpu_custom_call.1} parent=1 // pred_check_branch
      %33 = sbr.rel (0) target = $region17
    $region16: #{tpu_custom_call.1} parent=1 // pred_region
      _
    $region17: #{tpu_custom_call.1} parent=1 // pred_fallthru
      _
    // Predicated region
    $region18: #{tpu_custom_call.1} parent=1 // pred_check
      _
    $region19: #{tpu_custom_call.1} parent=1 // pred_check_branch
      %35 = sbr.rel (0) target = $region21
    $region20: #{tpu_custom_call.1} parent=1 // pred_region
      _
    $region21: #{tpu_custom_call.1} parent=1 // pred_fallthru
      _
    // Predicated region
    $region22: #{tpu_custom_call.1} parent=1 // pred_check
      _
    $region23: #{tpu_custom_call.1} parent=1 // pred_check_branch
      %37 = sbr.rel (0) target = $region25
    $region24: #{tpu_custom_call.1} parent=1 // pred_region
      %38 = dma.done [#allocation4], 768
    $region25: #{tpu_custom_call.1} parent=1 // pred_fallthru
      _
    %v39 = vld [vmem:[%s0] sm:$0xff]
    %v40 = vld [vmem:[%s0 + $0x8] sm:$0xff]
    %v41 = vld [vmem:[%s0 + $0x10] sm:$0xff]
    %v42 = vld [vmem:[%s0 + $0x18] sm:$0xff]
    %v43 = vld [vmem:[#allocation3] sm:$0xff]
    %v44 = vld [vmem:[#allocation3 + $0x8] sm:$0xff]
    %v45 = vld [vmem:[#allocation3 + $0x10] sm:$0xff]
    %v46 = vld [vmem:[#allocation3 + $0x18] sm:$0xff]
    %v47 = vld [vmem:[#allocation3 + $0x20] sm:$0xff]
    %v48 = vld [vmem:[#allocation3 + $0x28] sm:$0xff]
    %v49 = vld [vmem:[%s2] sm:$0xff]
    %v50 = vld [vmem:[%s2 + $0x8] sm:$0xff]
    %v51 = vld [vmem:[%s2 + $0x10] sm:$0xff]
    %v52 = vld [vmem:[%s2 + $0x18] sm:$0xff]
    %v53 = vld [vmem:[%s3] sm:$0x1]
    %v54 = vld [vmem:[%s3 + $0x1] sm:$0x1]
    %s55 = sld [smem:[#allocation2]]
    %56 = vmatprep.subr.mxu0 0.0
    %57 = vmatpush1.xpose.msra.mxu0 %v43
    %58 = vmatprep.subr.mxu0 0.0
    %59 = vmatpush1.xpose.msra.mxu0 %v44
    %60 = vmatprep.subr.mxu0 0.0
    %61 = vmatpush1.xpose.msra.mxu0 %v45
    %62 = vmatprep.subr.mxu0 0.0
    %63 = vmatpush1.xpose.msra.mxu0 0.0
    %64 = vmatprep.subr.mxu0 0.0
    %65 = vmatpush1.xpose.msra.mxu0 0.0
    %66 = vmatprep.subr.mxu0 0.0
    %67 = vmatpush1.xpose.msra.mxu0 0.0
    %68 = vmatprep.subr.mxu0 0.0
    %69 = vmatpush1.xpose.msra.mxu0 0.0
    %70 = vmatprep.subr.mxu0 0.0
    %71 = vmatpush1.xpose.msra.mxu0 0.0
    %72 = vmatprep.subr.mxu0 0.0
    %73 = vmatpush1.xpose.msra.mxu0 0.0
    %74 = vmatprep.subr.mxu0 0.0
    %75 = vmatpush1.xpose.msra.mxu0 0.0
    %76 = vmatprep.subr.mxu0 0.0
    %77 = vmatpush1.xpose.msra.mxu0 0.0
    %78 = vmatprep.subr.mxu0 0.0
    %79 = vmatpush1.xpose.msra.mxu0 0.0
    %80 = vmatprep.subr.mxu0 0.0
    %81 = vmatpush1.xpose.msra.mxu0 0.0
    %82 = vmatprep.subr.mxu0 0.0
    %83 = vmatpush1.xpose.msra.mxu0 0.0
    %84 = vmatprep.subr.mxu0 0.0
    %85 = vmatpush1.xpose.msra.mxu0 0.0
    %86 = vmatprep.subr.mxu0 0.0
    %87 = vmatpush1.xpose.msra.mxu0 0.0
    %88 = vmatprep.subr.mxu0 0.0
    %89 = vmatpush1.xpose.msra.mxu0 0.0
    %90 = vmatprep.subr.mxu0 0.0
    %91 = vmatpush1.xpose.msra.mxu0 0.0
    %92 = vmatprep.subr.mxu0 0.0
    %93 = vmatpush1.xpose.msra.mxu0 0.0
    %94 = vmatprep.subr.mxu0 0.0
    %95 = vmatpush1.xpose.msra.mxu0 0.0
    %96 = vmatprep.subr.mxu0 0.0
    %97 = vmatpush1.xpose.msra.mxu0 0.0
    %98 = vmatprep.subr.mxu0 0.0
    %99 = vmatpush1.xpose.msra.mxu0 0.0
    %100 = vmatprep.subr.mxu0 0.0
    %101 = vmatpush1.xpose.msra.mxu0 0.0
    %102 = vmatprep.subr.mxu0 0.0
    %103 = vmatpush1.xpose.msra.mxu0 0.0
    %104 = vmatprep.subr.mxu0 0.0
    %105 = vmatpush1.xpose.msra.mxu0 0.0
    %106 = vmatprep.subr.mxu0 0.0
    %107 = vmatpush1.xpose.msra.mxu0 0.0
    %108 = vmatprep.subr.mxu0 0.0
    %109 = vmatpush1.xpose.msra.mxu0 0.0
    %110 = vmatprep.subr.mxu0 0.0
    %111 = vmatpush1.xpose.msra.mxu0 0.0
    %112 = vmatprep.subr.mxu0 0.0
    %113 = vmatpush1.xpose.msra.mxu0 0.0
    %114 = vmatprep.subr.mxu0 0.0
    %115 = vmatpush1.xpose.msra.mxu0 0.0
    %116 = vmatprep.subr.mxu0 0.0
    %117 = vmatpush1.xpose.msra.mxu0 0.0
    %118 = vmatprep.subr.mxu0 0.0
    %119 = vmatpush1.xpose.msra.mxu0 0.0
    %120 = vmatprep.mubr.f32.mxu0 0.0
    %121 = vmatmul.mubr.f32.gmra.mrb[0].mxu0 %v39
    %v122 = vpop.f32.mrb[0].mxu0
    %v123 = vadd.f32 0.0, %v122
    %v124 = vpop.f32.mrb[0].mxu0
    %125 = vmatprep.mubr.f32.mxu0 0.0
    %126 = vmatmul.mubr.f32.gmra.mrb[0].mxu0 %v40
    %v127 = vpop.f32.mrb[0].mxu0
    %v128 = vadd.f32 0.0, %v127
    %v129 = vpop.f32.mrb[0].mxu0
    %130 = vdwg.mxu0
    %131 = vmatprep.subr.mxu0 0.0
    %132 = vmatpush1.xpose.msra.mxu0 %v46
    %133 = vmatprep.subr.mxu0 0.0
    %134 = vmatpush1.xpose.msra.mxu0 %v47
    %135 = vmatprep.subr.mxu0 0.0
    %136 = vmatpush1.xpose.msra.mxu0 %v48
    %137 = vmatprep.subr.mxu0 0.0
    %138 = vmatpush1.xpose.msra.mxu0 0.0
    %139 = vmatprep.subr.mxu0 0.0
    %140 = vmatpush1.xpose.msra.mxu0 0.0
    %141 = vmatprep.subr.mxu0 0.0
    %142 = vmatpush1.xpose.msra.mxu0 0.0
    %143 = vmatprep.subr.mxu0 0.0
    %144 = vmatpush1.xpose.msra.mxu0 0.0
    %145 = vmatprep.subr.mxu0 0.0
    %146 = vmatpush1.xpose.msra.mxu0 0.0
    %147 = vmatprep.subr.mxu0 0.0
    %148 = vmatpush1.xpose.msra.mxu0 0.0
    %149 = vmatprep.subr.mxu0 0.0
    %150 = vmatpush1.xpose.msra.mxu0 0.0
    %151 = vmatprep.subr.mxu0 0.0
    %152 = vmatpush1.xpose.msra.mxu0 0.0
    %153 = vmatprep.subr.mxu0 0.0
    %154 = vmatpush1.xpose.msra.mxu0 0.0
    %155 = vmatprep.subr.mxu0 0.0
    %156 = vmatpush1.xpose.msra.mxu0 0.0
    %157 = vmatprep.subr.mxu0 0.0
    %158 = vmatpush1.xpose.msra.mxu0 0.0
    %159 = vmatprep.subr.mxu0 0.0
    %160 = vmatpush1.xpose.msra.mxu0 0.0
    %161 = vmatprep.subr.mxu0 0.0
    %162 = vmatpush1.xpose.msra.mxu0 0.0
    %163 = vmatprep.subr.mxu0 0.0
    %164 = vmatpush1.xpose.msra.mxu0 0.0
    %165 = vmatprep.subr.mxu0 0.0
    %166 = vmatpush1.xpose.msra.mxu0 0.0
    %167 = vmatprep.subr.mxu0 0.0
    %168 = vmatpush1.xpose.msra.mxu0 0.0
    %169 = vmatprep.subr.mxu0 0.0
    %170 = vmatpush1.xpose.msra.mxu0 0.0
    %171 = vmatprep.subr.mxu0 0.0
    %172 = vmatpush1.xpose.msra.mxu0 0.0
    %173 = vmatprep.subr.mxu0 0.0
    %174 = vmatpush1.xpose.msra.mxu0 0.0
    %175 = vmatprep.subr.mxu0 0.0
    %176 = vmatpush1.xpose.msra.mxu0 0.0
    %177 = vmatprep.subr.mxu0 0.0
    %178 = vmatpush1.xpose.msra.mxu0 0.0
    %179 = vmatprep.subr.mxu0 0.0
    %180 = vmatpush1.xpose.msra.mxu0 0.0
    %181 = vmatprep.subr.mxu0 0.0
    %182 = vmatpush1.xpose.msra.mxu0 0.0
    %183 = vmatprep.subr.mxu0 0.0
    %184 = vmatpush1.xpose.msra.mxu0 0.0
    %185 = vmatprep.subr.mxu0 0.0
    %186 = vmatpush1.xpose.msra.mxu0 0.0
    %187 = vmatprep.subr.mxu0 0.0
    %188 = vmatpush1.xpose.msra.mxu0 0.0
    %189 = vmatprep.subr.mxu0 0.0
    %190 = vmatpush1.xpose.msra.mxu0 0.0
    %191 = vmatprep.subr.mxu0 0.0
    %192 = vmatpush1.xpose.msra.mxu0 0.0
    %193 = vmatprep.subr.mxu0 0.0
    %194 = vmatpush1.xpose.msra.mxu0 0.0
    %195 = vmatprep.mubr.f32.mxu0 0.0
    %196 = vmatmul.mubr.f32.gmra.mrb[0].mxu0 %v41
    %v197 = vpop.f32.mrb[0].mxu0
    %v198 = vadd.f32 0.0, %v197
    %v199 = vpop.f32.mrb[0].mxu0
    %200 = vmatprep.mubr.f32.mxu0 0.0
    %201 = vmatmul.mubr.f32.gmra.mrb[0].mxu0 %v42
    %v202 = vpop.f32.mrb[0].mxu0
    %v203 = vadd.f32 0.0, %v202
    %v204 = vpop.f32.mrb[0].mxu0
    %205 = vdwg.mxu0
    %v206 = vstv %s55
    %v207 = vmul.f32 %v123, %v206
    %v208 = vmul.f32 %v128, %v206
    %v209 = vmul.f32 %v198, %v206
    %v210 = vmul.f32 %v203, %v206
    %212 = vset.pattern.permute.xlu0 0
    %213 = vperm.xlu0 %212, %v49
    %v214 = vpop.permute.xlu0 %213
    %217 = vset.pattern.permute.xlu0 0
    %218 = vperm.xlu0 %217, %v50
    %v219 = vpop.permute.xlu0 %218
    %222 = vset.pattern.permute.xlu0 0
    %223 = vperm.xlu0 %222, %v51
    %v224 = vpop.permute.xlu0 %223
    %227 = vset.pattern.permute.xlu0 0
    %228 = vperm.xlu0 %227, %v52
    %v229 = vpop.permute.xlu0 %228
    %v233 = vlaneseq
    %v234 = vshrl.u32 %v233, 7
    %v235 = vsub.s32 0, %v234
    %v236 = vrot.slane %v53, %v235
    %v237 = vlaneseq
    %v238 = vshrl.u32 %v237, 7
    %v239 = vsub.s32 0, %v238
    %v240 = vrot.slane %v54, %v239
    %v243 = vmul.f32 %v214, %v236
    %v244 = vmul.f32 %v219, %v236
    %v245 = vmul.f32 %v224, %v240
    %v246 = vmul.f32 %v229, %v240
    %vm247 = vcmp.gt.f32.partialorder %v243, 0.0
    %vm248 = vcmp.gt.f32.partialorder %v244, 0.0
    %vm249 = vcmp.gt.f32.partialorder %v245, 0.0
    %vm250 = vcmp.gt.f32.partialorder %v246, 0.0
    %v251 = vsel %vm247, %v207, -10000000.0
    %v252 = vsel %vm248, %v208, -10000000.0
    %v253 = vsel %vm249, %v209, -10000000.0
    %v254 = vsel %vm250, %v210, -10000000.0
    %vm255 = vcmask 195584
    %v256 = vsel %vm255, %v251, -inf
    %v257 = vsel %vm255, %v252, -inf
    %v258 = vmax.f32 %v256, %v257
    %v259 = vrot.slane %v258, 4
    %v260 = vmax.f32 %v258, %v259
    %v261 = vrot.slane %v260, 2
    %v262 = vmax.f32 %v260, %v261
    %v263 = vrot.slane %v262, 1
    %v264 = vmax.f32 %v262, %v263
    %v265 = vsel %vm255, %v253, -inf
    %v266 = vsel %vm255, %v254, -inf
    %v267 = vmax.f32 %v265, %v266
    %v268 = vrot.slane %v267, 4
    %v269 = vmax.f32 %v267, %v268
    %v270 = vrot.slane %v269, 2
    %v271 = vmax.f32 %v269, %v270
    %v272 = vrot.slane %v271, 1
    %v273 = vmax.f32 %v271, %v272
    %v274 = vsub.f32 %v251, %v264
    %v275 = vsub.f32 %v252, %v264
    %v276 = vsub.f32 %v253, %v273
    %v277 = vsub.f32 %v254, %v273
    %v278 = vmul.f32 %v274, 1.442695
    %v279 = vpow.pop %v278
    %v280 = vmul.f32 %v275, 1.442695
    %v281 = vpow.pop %v280
    %v282 = vmul.f32 %v276, 1.442695
    %v283 = vpow.pop %v282
    %v284 = vmul.f32 %v277, 1.442695
    %v285 = vpow.pop %v284
    %v286 = vsel %vm255, %v279, 0.0
    %v287 = vsel %vm255, %v281, 0.0
    %v288 = vadd.f32 %v286, %v287
    %v289 = vrot.slane %v288, 4
    %v290 = vadd.f32 %v288, %v289
    %v291 = vrot.slane %v290, 2
    %v292 = vadd.f32 %v290, %v291
    %v293 = vrot.slane %v292, 1
    %v294 = vadd.f32 %v292, %v293
    %v295 = vsel %vm255, %v283, 0.0
    %v296 = vsel %vm255, %v285, 0.0
    %v297 = vadd.f32 %v295, %v296
    %v298 = vrot.slane %v297, 4
    %v299 = vadd.f32 %v297, %v298
    %v300 = vrot.slane %v299, 2
    %v301 = vadd.f32 %v299, %v300
    %v302 = vrot.slane %v301, 1
    %v303 = vadd.f32 %v301, %v302
    %v304 = vrcp.pop %v294
    %v305 = vrcp.pop %v303
    %v306 = vmul.f32 %v294, %v304
    %v307 = vmul.f32 %v303, %v305
    %v308 = vsub.f32 2.0, %v306
    %v309 = vsub.f32 2.0, %v307
    %v310 = vmul.f32 %v304, %v308
    %v311 = vmul.f32 %v305, %v309
    %v312 = vmul.f32 %v279, %v310
    %v313 = vmul.f32 %v281, %v310
    %v314 = vmul.f32 %v283, %v311
    %v315 = vmul.f32 %v285, %v311
    %316 = vmax.xlane.f32.xlu0 %v256
    %v317 = vpop.xlane.xlu0 %316
    %318 = vmax.xlane.f32.xlu0 %v257
    %v319 = vpop.xlane.xlu0 %318
    %320 = vmax.xlane.f32.xlu0 %v265
    %v321 = vpop.xlane.xlu0 %320
    %322 = vmax.xlane.f32.xlu0 %v266
    %v323 = vpop.xlane.xlu0 %322
    %v324 = vsub.f32 %v251, %v317
    %v325 = vsub.f32 %v252, %v319
    %v326 = vsub.f32 %v253, %v321
    %v327 = vsub.f32 %v254, %v323
    %v328 = vmul.f32 %v324, 1.442695
    %v329 = vpow.pop %v328
    %v330 = vmul.f32 %v325, 1.442695
    %v331 = vpow.pop %v330
    %v332 = vmul.f32 %v326, 1.442695
    %v333 = vpow.pop %v332
    %v334 = vmul.f32 %v327, 1.442695
    %v335 = vpow.pop %v334
    %v336 = vsel %vm255, %v329, 0.0
    %337 = vadd.xlane.f32.xlu0 %v336
    %v338 = vpop.xlane.xlu0 %337
    %v339 = vsel %vm255, %v331, 0.0
    %340 = vadd.xlane.f32.xlu0 %v339
    %v341 = vpop.xlane.xlu0 %340
    %v342 = vsel %vm255, %v333, 0.0
    %343 = vadd.xlane.f32.xlu0 %v342
    %v344 = vpop.xlane.xlu0 %343
    %v345 = vsel %vm255, %v335, 0.0
    %346 = vadd.xlane.f32.xlu0 %v345
    %v347 = vpop.xlane.xlu0 %346
    %v348 = vrcp.pop %v338
    %v349 = vrcp.pop %v341
    %v350 = vrcp.pop %v344
    %v351 = vrcp.pop %v347
    %v352 = vmul.f32 %v338, %v348
    %v353 = vmul.f32 %v341, %v349
    %v354 = vmul.f32 %v344, %v350
    %v355 = vmul.f32 %v347, %v351
    %v356 = vsub.f32 2.0, %v352
    %v357 = vsub.f32 2.0, %v353
    %v358 = vsub.f32 2.0, %v354
    %v359 = vsub.f32 2.0, %v355
    %v360 = vmul.f32 %v348, %v356
    %v361 = vmul.f32 %v349, %v357
    %v362 = vmul.f32 %v350, %v358
    %v363 = vmul.f32 %v351, %v359
    %v364 = vmul.f32 %v329, %v360
    %v365 = vmul.f32 %v331, %v361
    %v366 = vmul.f32 %v333, %v362
    %v367 = vmul.f32 %v335, %v363
    %368 = vxpose.xlu0.b32.start [1/16] %v312, 128
    %369 = vxpose.xlu0.b32.cont [2/16] %v313, 128
    %370 = vxpose.xlu0.b32.cont [3/16] 0.0, 128
    %371 = vxpose.xlu0.b32.cont [4/16] 0.0, 128
    %372 = vxpose.xlu0.b32.cont [5/16] 0.0, 128
    %373 = vxpose.xlu0.b32.cont [6/16] 0.0, 128
    %374 = vxpose.xlu0.b32.cont [7/16] 0.0, 128
    %375 = vxpose.xlu0.b32.cont [8/16] 0.0, 128
    %376 = vxpose.xlu0.b32.cont [9/16] 0.0, 128
    %377 = vxpose.xlu0.b32.cont [10/16] 0.0, 128
    %378 = vxpose.xlu0.b32.cont [11/16] 0.0, 128
    %379 = vxpose.xlu0.b32.cont [12/16] 0.0, 128
    %380 = vxpose.xlu0.b32.cont [13/16] 0.0, 128
    %381 = vxpose.xlu0.b32.cont [14/16] 0.0, 128
    %382 = vxpose.xlu0.b32.cont [15/16] 0.0, 128
    %383 = vxpose.xlu0.b32.end [16/16] 0.0, 128
    %v384 = vpop.trf.xlu0
    %v385 = vpop.trf.xlu0
    %v386 = vpop.trf.xlu0
    %v387 = vpop.trf.xlu0
    %v388 = vpop.trf.xlu0
    %v389 = vpop.trf.xlu0
    %v390 = vpop.trf.xlu0
    %v391 = vpop.trf.xlu0
    %v392 = vpop.trf.xlu0
    %v393 = vpop.trf.xlu0
    %v394 = vpop.trf.xlu0
    %v395 = vpop.trf.xlu0
    %v396 = vpop.trf.xlu0
    %v397 = vpop.trf.xlu0
    %v398 = vpop.trf.xlu0
    %v399 = vpop.trf.xlu0
    %vm400 = vcmask 130048
    %v402 = vsel %vm400, %v384, 0
    %v405 = vsel %vm400, %v385, 0
    %v408 = vsel %vm400, %v386, 0
    %410 = vmatprep.subr.mxu0 0.0
    %411 = vmatpush1.msra.mxu0 %v39
    %412 = vmatprep.subr.mxu0 0.0
    %413 = vmatpush1.msra.mxu0 %v40
    %414 = vmatprep.subr.mxu0 0.0
    %415 = vmatpush1.msra.mxu0 0.0
    %416 = vmatprep.subr.mxu0 0.0
    %417 = vmatpush1.msra.mxu0 0.0
    %418 = vmatprep.subr.mxu0 0.0
    %419 = vmatpush1.msra.mxu0 0.0
    %420 = vmatprep.subr.mxu0 0.0
    %421 = vmatpush1.msra.mxu0 0.0
    %422 = vmatprep.subr.mxu0 0.0
    %423 = vmatpush1.msra.mxu0 0.0
    %424 = vmatprep.subr.mxu0 0.0
    %425 = vmatpush1.msra.mxu0 0.0
    %426 = vmatprep.subr.mxu0 0.0
    %427 = vmatpush1.msra.mxu0 0.0
    %428 = vmatprep.subr.mxu0 0.0
    %429 = vmatpush1.msra.mxu0 0.0
    %430 = vmatprep.subr.mxu0 0.0
    %431 = vmatpush1.msra.mxu0 0.0
    %432 = vmatprep.subr.mxu0 0.0
    %433 = vmatpush1.msra.mxu0 0.0
    %434 = vmatprep.subr.mxu0 0.0
    %435 = vmatpush1.msra.mxu0 0.0
    %436 = vmatprep.subr.mxu0 0.0
    %437 = vmatpush1.msra.mxu0 0.0
    %438 = vmatprep.subr.mxu0 0.0
    %439 = vmatpush1.msra.mxu0 0.0
    %440 = vmatprep.subr.mxu0 0.0
    %441 = vmatpush1.msra.mxu0 0.0
    %442 = vmatprep.subr.mxu0 0.0
    %443 = vmatpush1.msra.mxu0 0.0
    %444 = vmatprep.subr.mxu0 0.0
    %445 = vmatpush1.msra.mxu0 0.0
    %446 = vmatprep.subr.mxu0 0.0
    %447 = vmatpush1.msra.mxu0 0.0
    %448 = vmatprep.subr.mxu0 0.0
    %449 = vmatpush1.msra.mxu0 0.0
    %450 = vmatprep.subr.mxu0 0.0
    %451 = vmatpush1.msra.mxu0 0.0
    %452 = vmatprep.subr.mxu0 0.0
    %453 = vmatpush1.msra.mxu0 0.0
    %454 = vmatprep.subr.mxu0 0.0
    %455 = vmatpush1.msra.mxu0 0.0
    %456 = vmatprep.subr.mxu0 0.0
    %457 = vmatpush1.msra.mxu0 0.0
    %458 = vmatprep.subr.mxu0 0.0
    %459 = vmatpush1.msra.mxu0 0.0
    %460 = vmatprep.subr.mxu0 0.0
    %461 = vmatpush1.msra.mxu0 0.0
    %462 = vmatprep.subr.mxu0 0.0
    %463 = vmatpush1.msra.mxu0 0.0
    %464 = vmatprep.subr.mxu0 0.0
    %465 = vmatpush1.msra.mxu0 0.0
    %466 = vmatprep.subr.mxu0 0.0
    %467 = vmatpush1.msra.mxu0 0.0
    %468 = vmatprep.subr.mxu0 0.0
    %469 = vmatpush1.msra.mxu0 0.0
    %470 = vmatprep.subr.mxu0 0.0
    %471 = vmatpush1.msra.mxu0 0.0
    %472 = vmatprep.subr.mxu0 0.0
    %473 = vmatpush1.msra.mxu0 0.0
    %474 = vmatprep.mubr.f32.mxu0 0.0
    %475 = vmatmul.mubr.f32.gmra.mrb[0].mxu0 %v402
    %v476 = vpop.f32.mrb[0].mxu0
    %v477 = vadd.f32 0.0, %v476
    %v478 = vpop.f32.mrb[0].mxu0
    %479 = vmatprep.mubr.f32.mxu0 0.0
    %480 = vmatmul.mubr.f32.gmra.mrb[0].mxu0 %v405
    %v481 = vpop.f32.mrb[0].mxu0
    %v482 = vadd.f32 0.0, %v481
    %v483 = vpop.f32.mrb[0].mxu0
    %484 = vmatprep.mubr.f32.mxu0 0.0
    %485 = vmatmul.mubr.f32.gmra.mrb[0].mxu0 %v408
    %v486 = vpop.f32.mrb[0].mxu0
    %v487 = vadd.f32 0.0, %v486
    %v488 = vpop.f32.mrb[0].mxu0
    %489 = vdwg.mxu0
    %490 = vxpose.xlu0.b32.start [1/16] %v314, 128
    %491 = vxpose.xlu0.b32.cont [2/16] %v315, 128
    %492 = vxpose.xlu0.b32.cont [3/16] 0.0, 128
    %493 = vxpose.xlu0.b32.cont [4/16] 0.0, 128
    %494 = vxpose.xlu0.b32.cont [5/16] 0.0, 128
    %495 = vxpose.xlu0.b32.cont [6/16] 0.0, 128
    %496 = vxpose.xlu0.b32.cont [7/16] 0.0, 128
    %497 = vxpose.xlu0.b32.cont [8/16] 0.0, 128
    %498 = vxpose.xlu0.b32.cont [9/16] 0.0, 128
    %499 = vxpose.xlu0.b32.cont [10/16] 0.0, 128
    %500 = vxpose.xlu0.b32.cont [11/16] 0.0, 128
    %501 = vxpose.xlu0.b32.cont [12/16] 0.0, 128
    %502 = vxpose.xlu0.b32.cont [13/16] 0.0, 128
    %503 = vxpose.xlu0.b32.cont [14/16] 0.0, 128
    %504 = vxpose.xlu0.b32.cont [15/16] 0.0, 128
    %505 = vxpose.xlu0.b32.end [16/16] 0.0, 128
    %v506 = vpop.trf.xlu0
    %v507 = vpop.trf.xlu0
    %v508 = vpop.trf.xlu0
    %v509 = vpop.trf.xlu0
    %v510 = vpop.trf.xlu0
    %v511 = vpop.trf.xlu0
    %v512 = vpop.trf.xlu0
    %v513 = vpop.trf.xlu0
    %v514 = vpop.trf.xlu0
    %v515 = vpop.trf.xlu0
    %v516 = vpop.trf.xlu0
    %v517 = vpop.trf.xlu0
    %v518 = vpop.trf.xlu0
    %v519 = vpop.trf.xlu0
    %v520 = vpop.trf.xlu0
    %v521 = vpop.trf.xlu0
    %v523 = vsel %vm400, %v506, 0
    %v526 = vsel %vm400, %v507, 0
    %v529 = vsel %vm400, %v508, 0
    %531 = vmatprep.subr.mxu0 0.0
    %532 = vmatpush1.msra.mxu0 %v41
    %533 = vmatprep.subr.mxu0 0.0
    %534 = vmatpush1.msra.mxu0 %v42
    %535 = vmatprep.subr.mxu0 0.0
    %536 = vmatpush1.msra.mxu0 0.0
    %537 = vmatprep.subr.mxu0 0.0
    %538 = vmatpush1.msra.mxu0 0.0
    %539 = vmatprep.subr.mxu0 0.0
    %540 = vmatpush1.msra.mxu0 0.0
    %541 = vmatprep.subr.mxu0 0.0
    %542 = vmatpush1.msra.mxu0 0.0
    %543 = vmatprep.subr.mxu0 0.0
    %544 = vmatpush1.msra.mxu0 0.0
    %545 = vmatprep.subr.mxu0 0.0
    %546 = vmatpush1.msra.mxu0 0.0
    %547 = vmatprep.subr.mxu0 0.0
    %548 = vmatpush1.msra.mxu0 0.0
    %549 = vmatprep.subr.mxu0 0.0
    %550 = vmatpush1.msra.mxu0 0.0
    %551 = vmatprep.subr.mxu0 0.0
    %552 = vmatpush1.msra.mxu0 0.0
    %553 = vmatprep.subr.mxu0 0.0
    %554 = vmatpush1.msra.mxu0 0.0
    %555 = vmatprep.subr.mxu0 0.0
    %556 = vmatpush1.msra.mxu0 0.0
    %557 = vmatprep.subr.mxu0 0.0
    %558 = vmatpush1.msra.mxu0 0.0
    %559 = vmatprep.subr.mxu0 0.0
    %560 = vmatpush1.msra.mxu0 0.0
    %561 = vmatprep.subr.mxu0 0.0
    %562 = vmatpush1.msra.mxu0 0.0
    %563 = vmatprep.subr.mxu0 0.0
    %564 = vmatpush1.msra.mxu0 0.0
    %565 = vmatprep.subr.mxu0 0.0
    %566 = vmatpush1.msra.mxu0 0.0
    %567 = vmatprep.subr.mxu0 0.0
    %568 = vmatpush1.msra.mxu0 0.0
    %569 = vmatprep.subr.mxu0 0.0
    %570 = vmatpush1.msra.mxu0 0.0
    %571 = vmatprep.subr.mxu0 0.0
    %572 = vmatpush1.msra.mxu0 0.0
    %573 = vmatprep.subr.mxu0 0.0
    %574 = vmatpush1.msra.mxu0 0.0
    %575 = vmatprep.subr.mxu0 0.0
    %576 = vmatpush1.msra.mxu0 0.0
    %577 = vmatprep.subr.mxu0 0.0
    %578 = vmatpush1.msra.mxu0 0.0
    %579 = vmatprep.subr.mxu0 0.0
    %580 = vmatpush1.msra.mxu0 0.0
    %581 = vmatprep.subr.mxu0 0.0
    %582 = vmatpush1.msra.mxu0 0.0
    %583 = vmatprep.subr.mxu0 0.0
    %584 = vmatpush1.msra.mxu0 0.0
    %585 = vmatprep.subr.mxu0 0.0
    %586 = vmatpush1.msra.mxu0 0.0
    %587 = vmatprep.subr.mxu0 0.0
    %588 = vmatpush1.msra.mxu0 0.0
    %589 = vmatprep.subr.mxu0 0.0
    %590 = vmatpush1.msra.mxu0 0.0
    %591 = vmatprep.subr.mxu0 0.0
    %592 = vmatpush1.msra.mxu0 0.0
    %593 = vmatprep.subr.mxu0 0.0
    %594 = vmatpush1.msra.mxu0 0.0
    %595 = vmatprep.mubr.f32.mxu0 0.0
    %596 = vmatmul.mubr.f32.gmra.mrb[0].mxu0 %v523
    %v597 = vpop.f32.mrb[0].mxu0
    %v598 = vadd.f32 0.0, %v597
    %v599 = vpop.f32.mrb[0].mxu0
    %600 = vmatprep.mubr.f32.mxu0 0.0
    %601 = vmatmul.mubr.f32.gmra.mrb[0].mxu0 %v526
    %v602 = vpop.f32.mrb[0].mxu0
    %v603 = vadd.f32 0.0, %v602
    %v604 = vpop.f32.mrb[0].mxu0
    %605 = vmatprep.mubr.f32.mxu0 0.0
    %606 = vmatmul.mubr.f32.gmra.mrb[0].mxu0 %v529
    %v607 = vpop.f32.mrb[0].mxu0
    %v608 = vadd.f32 0.0, %v607
    %v609 = vpop.f32.mrb[0].mxu0
    %610 = vdwg.mxu0
    %v612 = vsel %vm255, %v364, 0
    %v615 = vsel %vm255, %v365, 0
    %617 = vmatprep.subr.mxu0 0.0
    %618 = vmatpush1.msra.mxu0 %v43
    %619 = vmatprep.subr.mxu0 0.0
    %620 = vmatpush1.msra.mxu0 %v44
    %621 = vmatprep.subr.mxu0 0.0
    %622 = vmatpush1.msra.mxu0 %v45
    %623 = vmatprep.subr.mxu0 0.0
    %624 = vmatpush1.msra.mxu0 0.0
    %625 = vmatprep.subr.mxu0 0.0
    %626 = vmatpush1.msra.mxu0 0.0
    %627 = vmatprep.subr.mxu0 0.0
    %628 = vmatpush1.msra.mxu0 0.0
    %629 = vmatprep.subr.mxu0 0.0
    %630 = vmatpush1.msra.mxu0 0.0
    %631 = vmatprep.subr.mxu0 0.0
    %632 = vmatpush1.msra.mxu0 0.0
    %633 = vmatprep.subr.mxu0 0.0
    %634 = vmatpush1.msra.mxu0 0.0
    %635 = vmatprep.subr.mxu0 0.0
    %636 = vmatpush1.msra.mxu0 0.0
    %637 = vmatprep.subr.mxu0 0.0
    %638 = vmatpush1.msra.mxu0 0.0
    %639 = vmatprep.subr.mxu0 0.0
    %640 = vmatpush1.msra.mxu0 0.0
    %641 = vmatprep.subr.mxu0 0.0
    %642 = vmatpush1.msra.mxu0 0.0
    %643 = vmatprep.subr.mxu0 0.0
    %644 = vmatpush1.msra.mxu0 0.0
    %645 = vmatprep.subr.mxu0 0.0
    %646 = vmatpush1.msra.mxu0 0.0
    %647 = vmatprep.subr.mxu0 0.0
    %648 = vmatpush1.msra.mxu0 0.0
    %649 = vmatprep.subr.mxu0 0.0
    %650 = vmatpush1.msra.mxu0 0.0
    %651 = vmatprep.subr.mxu0 0.0
    %652 = vmatpush1.msra.mxu0 0.0
    %653 = vmatprep.subr.mxu0 0.0
    %654 = vmatpush1.msra.mxu0 0.0
    %655 = vmatprep.subr.mxu0 0.0
    %656 = vmatpush1.msra.mxu0 0.0
    %657 = vmatprep.subr.mxu0 0.0
    %658 = vmatpush1.msra.mxu0 0.0
    %659 = vmatprep.subr.mxu0 0.0
    %660 = vmatpush1.msra.mxu0 0.0
    %661 = vmatprep.subr.mxu0 0.0
    %662 = vmatpush1.msra.mxu0 0.0
    %663 = vmatprep.subr.mxu0 0.0
    %664 = vmatpush1.msra.mxu0 0.0
    %665 = vmatprep.subr.mxu0 0.0
    %666 = vmatpush1.msra.mxu0 0.0
    %667 = vmatprep.subr.mxu0 0.0
    %668 = vmatpush1.msra.mxu0 0.0
    %669 = vmatprep.subr.mxu0 0.0
    %670 = vmatpush1.msra.mxu0 0.0
    %671 = vmatprep.subr.mxu0 0.0
    %672 = vmatpush1.msra.mxu0 0.0
    %673 = vmatprep.subr.mxu0 0.0
    %674 = vmatpush1.msra.mxu0 0.0
    %675 = vmatprep.subr.mxu0 0.0
    %676 = vmatpush1.msra.mxu0 0.0
    %677 = vmatprep.subr.mxu0 0.0
    %678 = vmatpush1.msra.mxu0 0.0
    %679 = vmatprep.subr.mxu0 0.0
    %680 = vmatpush1.msra.mxu0 0.0
    %681 = vmatprep.mubr.f32.mxu0 0.0
    %682 = vmatmul.mubr.f32.gmra.mrb[0].mxu0 %v612
    %v683 = vpop.f32.mrb[0].mxu0
    %v684 = vadd.f32 0.0, %v683
    %v685 = vpop.f32.mrb[0].mxu0
    %686 = vmatprep.mubr.f32.mxu0 0.0
    %687 = vmatmul.mubr.f32.gmra.mrb[0].mxu0 %v615
    %v688 = vpop.f32.mrb[0].mxu0
    %v689 = vadd.f32 0.0, %v688
    %v690 = vpop.f32.mrb[0].mxu0
    %691 = vdwg.mxu0
    %v693 = vsel %vm255, %v366, 0
    %v696 = vsel %vm255, %v367, 0
    %698 = vmatprep.subr.mxu0 0.0
    %699 = vmatpush1.msra.mxu0 %v46
    %700 = vmatprep.subr.mxu0 0.0
    %701 = vmatpush1.msra.mxu0 %v47
    %702 = vmatprep.subr.mxu0 0.0
    %703 = vmatpush1.msra.mxu0 %v48
    %704 = vmatprep.subr.mxu0 0.0
    %705 = vmatpush1.msra.mxu0 0.0
    %706 = vmatprep.subr.mxu0 0.0
    %707 = vmatpush1.msra.mxu0 0.0
    %708 = vmatprep.subr.mxu0 0.0
    %709 = vmatpush1.msra.mxu0 0.0
    %710 = vmatprep.subr.mxu0 0.0
    %711 = vmatpush1.msra.mxu0 0.0
    %712 = vmatprep.subr.mxu0 0.0
    %713 = vmatpush1.msra.mxu0 0.0
    %714 = vmatprep.subr.mxu0 0.0
    %715 = vmatpush1.msra.mxu0 0.0
    %716 = vmatprep.subr.mxu0 0.0
    %717 = vmatpush1.msra.mxu0 0.0
    %718 = vmatprep.subr.mxu0 0.0
    %719 = vmatpush1.msra.mxu0 0.0
    %720 = vmatprep.subr.mxu0 0.0
    %721 = vmatpush1.msra.mxu0 0.0
    %722 = vmatprep.subr.mxu0 0.0
    %723 = vmatpush1.msra.mxu0 0.0
    %724 = vmatprep.subr.mxu0 0.0
    %725 = vmatpush1.msra.mxu0 0.0
    %726 = vmatprep.subr.mxu0 0.0
    %727 = vmatpush1.msra.mxu0 0.0
    %728 = vmatprep.subr.mxu0 0.0
    %729 = vmatpush1.msra.mxu0 0.0
    %730 = vmatprep.subr.mxu0 0.0
    %731 = vmatpush1.msra.mxu0 0.0
    %732 = vmatprep.subr.mxu0 0.0
    %733 = vmatpush1.msra.mxu0 0.0
    %734 = vmatprep.subr.mxu0 0.0
    %735 = vmatpush1.msra.mxu0 0.0
    %736 = vmatprep.subr.mxu0 0.0
    %737 = vmatpush1.msra.mxu0 0.0
    %738 = vmatprep.subr.mxu0 0.0
    %739 = vmatpush1.msra.mxu0 0.0
    %740 = vmatprep.subr.mxu0 0.0
    %741 = vmatpush1.msra.mxu0 0.0
    %742 = vmatprep.subr.mxu0 0.0
    %743 = vmatpush1.msra.mxu0 0.0
    %744 = vmatprep.subr.mxu0 0.0
    %745 = vmatpush1.msra.mxu0 0.0
    %746 = vmatprep.subr.mxu0 0.0
    %747 = vmatpush1.msra.mxu0 0.0
    %748 = vmatprep.subr.mxu0 0.0
    %749 = vmatpush1.msra.mxu0 0.0
    %750 = vmatprep.subr.mxu0 0.0
    %751 = vmatpush1.msra.mxu0 0.0
    %752 = vmatprep.subr.mxu0 0.0
    %753 = vmatpush1.msra.mxu0 0.0
    %754 = vmatprep.subr.mxu0 0.0
    %755 = vmatpush1.msra.mxu0 0.0
    %756 = vmatprep.subr.mxu0 0.0
    %757 = vmatpush1.msra.mxu0 0.0
    %758 = vmatprep.subr.mxu0 0.0
    %759 = vmatpush1.msra.mxu0 0.0
    %760 = vmatprep.subr.mxu0 0.0
    %761 = vmatpush1.msra.mxu0 0.0
    %762 = vmatprep.mubr.f32.mxu0 0.0
    %763 = vmatmul.mubr.f32.gmra.mrb[0].mxu0 %v693
    %v764 = vpop.f32.mrb[0].mxu0
    %v765 = vadd.f32 0.0, %v764
    %v766 = vpop.f32.mrb[0].mxu0
    %767 = vmatprep.mubr.f32.mxu0 0.0
    %768 = vmatmul.mubr.f32.gmra.mrb[0].mxu0 %v696
    %v769 = vpop.f32.mrb[0].mxu0
    %v770 = vadd.f32 0.0, %v769
    %v771 = vpop.f32.mrb[0].mxu0
    %772 = vdwg.mxu0
    %773 = vst [vmem:[#allocation6] sm:$0xff] %v39
    %774 = vst [vmem:[#allocation6 + $0x10] sm:$0xff] %v40
    %775 = vst [vmem:[#allocation6 + $0x20] sm:$0xff] %v41
    %776 = vst [vmem:[#allocation6 + $0x30] sm:$0xff] %v42
    %777 = vst [vmem:[#allocation6 + $0x8] sm:$0xff] %v684
    %778 = vst [vmem:[#allocation6 + $0x18] sm:$0xff] %v689
    %779 = vst [vmem:[#allocation6 + $0x28] sm:$0xff] %v765
    %780 = vst [vmem:[#allocation6 + $0x38] sm:$0xff] %v770
    %781 = vst [vmem:[#allocation7] sm:$0xff] %v43
    %782 = vst [vmem:[#allocation7 + $0x10] sm:$0xff] %v44
    %783 = vst [vmem:[#allocation7 + $0x20] sm:$0xff] %v45
    %784 = vst [vmem:[#allocation7 + $0x30] sm:$0xff] %v46
    %785 = vst [vmem:[#allocation7 + $0x40] sm:$0xff] %v47
    %786 = vst [vmem:[#allocation7 + $0x50] sm:$0xff] %v48
    %787 = vst [vmem:[#allocation7 + $0x8] sm:$0xff] %v477
    %788 = vst [vmem:[#allocation7 + $0x18] sm:$0xff] %v482
    %789 = vst [vmem:[#allocation7 + $0x28] sm:$0xff] %v487
    %790 = vst [vmem:[#allocation7 + $0x38] sm:$0xff] %v598
    %791 = vst [vmem:[#allocation7 + $0x48] sm:$0xff] %v603
    %792 = vst [vmem:[#allocation7 + $0x58] sm:$0xff] %v608
    // Predicated region
    $region26: #{tpu_custom_call.1} parent=1 // pred_check
      _
    $region27: #{tpu_custom_call.1} parent=1 // pred_check_branch
      %794 = sbr.rel (0) target = $region29
    $region28: #{tpu_custom_call.1} parent=1 // pred_region
      %s796 = ssub.s32 1024, 1024
      %797 = vsyncadd [#allocation5], %s796
      %s798 = sshll.u32 [#allocation6], 4
      %s799 = int_to_ptr.vmem [resolvable:$true] %s798
      %804 = dma.vmem_to_hbm [thread:$0]  %s799, 1024, %s5, [#allocation5], 256, 256, 16
    $region29: #{tpu_custom_call.1} parent=1 // pred_fallthru
      _
    // Predicated region
    $region30: #{tpu_custom_call.1} parent=1 // pred_check
      _
    $region31: #{tpu_custom_call.1} parent=1 // pred_check_branch
      %806 = sbr.rel (0) target = $region33
    $region32: #{tpu_custom_call.1} parent=1 // pred_region
      %s808 = ssub.s32 1536, 1536
      %809 = vsyncadd [#allocation8], %s808
      %s810 = sshll.u32 [#allocation7], 4
      %s811 = int_to_ptr.vmem [resolvable:$true] %s810
      %816 = dma.vmem_to_hbm [thread:$0]  %s811, 1536, %s6, [#allocation8], 256, 256, 16
    $region33: #{tpu_custom_call.1} parent=1 // pred_fallthru
      _
    // Predicated region
    $region34: #{tpu_custom_call.1} parent=1 // pred_check
      _
    $region35: #{tpu_custom_call.1} parent=1 // pred_check_branch
      %818 = sbr.rel (0) target = $region37
    $region36: #{tpu_custom_call.1} parent=1 // pred_region
      %819 = dma.done [#allocation5], 1024
    $region37: #{tpu_custom_call.1} parent=1 // pred_fallthru
      _
    // Predicated region
    $region38: #{tpu_custom_call.1} parent=1 // pred_check
      _
    $region39: #{tpu_custom_call.1} parent=1 // pred_check_branch
      %821 = sbr.rel (0) target = $region41
    $region40: #{tpu_custom_call.1} parent=1 // pred_region
      %822 = dma.done [#allocation8], 1536
    $region41: #{tpu_custom_call.1} parent=1 // pred_fallthru
      _
    %823 = vsyncpa [#allocation4], 1
    %824 = vsyncpa [#allocation5], 1
    %825 = vsyncpa [#allocation8], 1

</llo_original>
